<compile_context>
chip_gen: v6e
topology: v6e:2x2x1
jax: 0.10.0
libtpu: 0.0.40
codegen_flags: <defaults>
</compile_context>

<pallas_src>
import jax
import jax.numpy as jnp
import numpy as np
from jax.experimental import pallas as pl
from jax.experimental.pallas import tpu as pltpu


def _as_i32(x: int) -> int:
    """Interpret a 32-bit hex constant as a signed int32 Python int."""
    x &= 0xFFFFFFFF
    return x - (1 << 32) if x >= (1 << 31) else x


_HASH_C1 = _as_i32(0x7FEB352D)
_HASH_C2 = _as_i32(0x846CA68B)


def _lshr(v, k):
    """Logical shift right on int32 values."""
    return jnp.right_shift(v, k) & jnp.int32((1 << (32 - k)) - 1)


def _approach_kernel(seed_ref,                      # SMEM scalar prefetch: (1,) int32 rng seed
                     x_ref, w1_ref, b1_ref, w2_ref, b2_ref,
                     res_ref, score_ref, inds_ref):
    x = x_ref[...]                                                   # (C, tn)

    # conv1 (1x1 Conv1d == matmul in native (C, N) layout) + ReLU -> res_features
    h = jnp.dot(w1_ref[...], x, preferred_element_type=jnp.float32) + b1_ref[...]
    h = jnp.maximum(h, 0.0)
    res_ref[...] = h.astype(res_ref.dtype)                           # (C, tn) -> (B, C, N)

    # conv2 (1x1 Conv1d == matmul) -> per-seed view scores, kept lane-dense as
    # (V, tn) and stored straight into the (B, V, N) output (unmasked stores).
    s = jnp.dot(w2_ref[...], h, preferred_element_type=jnp.float32) + b2_ref[...]   # (V, tn)
    score_ref[...] = s.astype(score_ref.dtype)

    # --- training branch: sample one view per seed ~ multinomial(weights) ---
    # weights = (s - s_min) / (s_max - s_min + eps); the positive per-row scale
    # is argmax-invariant, so only the min-shift matters for the race below.
    nv, tn = s.shape
    w = s - jnp.min(s, axis=0, keepdims=True)                        # (nv, tn), >= 0

    b = pl.program_id(0)
    j = pl.program_id(1)
    tile_lin = b * pl.num_programs(1) + j

    # Counter-based hash RNG (single multiply + xorshift finalizer), all int32
    # jnp ops so it lowers cleanly on Mosaic.
    vid = jax.lax.broadcasted_iota(jnp.int32, (nv, tn), 0)           # view index (sublanes)
    sid = jax.lax.broadcasted_iota(jnp.int32, (nv, tn), 1)           # seed-in-tile (lanes)
    lin = (tile_lin * tn + sid) * nv + vid                           # unique counter / element

    seed_mix = seed_ref[0] * jnp.int32(_HASH_C2)                     # scalar seed mixing
    z = (lin ^ seed_mix) * jnp.int32(_HASH_C1)
    z = z ^ _lshr(z, 16)
    bits = _lshr(z, 8)                                               # 24 random bits, >= 0
    u = (bits.astype(jnp.float32) + 0.5) * jnp.float32(1.0 / (1 << 24))   # uniform in (0, 1)
    e = -jnp.log(u)                                                  # Exp(1) noise

    # Exponential race: argmax_v w_v / E_v  ~  categorical(w / sum(w)).
    # Divide goes through the EUP reciprocal; argmax over the sublane axis is
    # built from max/min reductions (first-match tie-break, same as argmax).
    r = w * pl.reciprocal(e, approx=True)                            # (nv, tn)
    m = jnp.max(r, axis=0, keepdims=True)                            # (1, tn)
    idx_f = jnp.min(jnp.where(r >= m, vid.astype(jnp.float32), jnp.float32(nv)), axis=0)
    inds_ref[...] = idx_f[None, :].astype(jnp.int32)                 # lane-dense (1, tn) store


def approach_net_forward(seed_features, params, sample_seed, *, num_view, tile_n=None):
    """Training-mode forward of ApproachNet.

    seed_features: (B, C, N) float32  (PyTorch Conv1d layout)
    params: {"w1": (C, C, 1), "b1": (C,), "w2": (V, C, 1), "b2": (V,)}
    Returns (end_points, res_features) like the PyTorch module.
    """
    B, C, N = seed_features.shape
    V = num_view
    if tile_n is None:
        tile_n = N                  # kernel is launch-bound: largest tile, grid = (B, 1)
    assert tile_n % 128 == 0, "tile_n must be a multiple of 128 (lane-dense stores)"
    assert N % tile_n == 0, "num_seed must be divisible by tile_n"

    # Native Conv1d weights (out, in): no transposes needed in this layout.
    w1 = params["w1"][:, :, 0]                       # (C, C)
    b1 = params["b1"].reshape(C, 1)
    w2 = params["w2"][:, :, 0]                       # (V, C)
    b2 = params["b2"].reshape(V, 1)
    seed_arr = jnp.asarray([sample_seed], dtype=jnp.int32)

    grid = (B, N // tile_n)
    grid_spec = pltpu.PrefetchScalarGridSpec(
        num_scalar_prefetch=1,
        grid=grid,
        in_specs=[
            pl.BlockSpec((None, C, tile_n), lambda b, j, s: (b, 0, j)),   # seed_features tile
            pl.BlockSpec((C, C), lambda b, j, s: (0, 0)),                 # W1 (resident)
            pl.BlockSpec((C, 1), lambda b, j, s: (0, 0)),                 # b1
            pl.BlockSpec((V, C), lambda b, j, s: (0, 0)),                 # W2 (resident)
            pl.BlockSpec((V, 1), lambda b, j, s: (0, 0)),                 # b2
        ],
        out_specs=[
            pl.BlockSpec((None, C, tile_n), lambda b, j, s: (b, 0, j)),   # res_features (B,C,N)
            pl.BlockSpec((None, V, tile_n), lambda b, j, s: (b, 0, j)),   # view_score   (B,V,N)
            pl.BlockSpec((None, 1, tile_n), lambda b, j, s: (b, 0, j)),   # inds         (B,1,N)
        ],
    )

    res_features, score_vn, inds3 = pl.pallas_call(
        _approach_kernel,
        grid_spec=grid_spec,
        out_shape=(
            jax.ShapeDtypeStruct((B, C, N), jnp.float32),
            jax.ShapeDtypeStruct((B, V, N), jnp.float32),
            jax.ShapeDtypeStruct((B, 1, N), jnp.int32),
        ),
        compiler_params=pltpu.CompilerParams(
            dimension_semantics=("parallel", "parallel")),   # independent axes -> megacore / 2xTC
    )(seed_arr, seed_features, w1, b1, w2, b2)

    # Wrapper-side layout plumbing back to PyTorch's (B, N, V) view_score.
    view_score = jnp.transpose(score_vn, (0, 2, 1))
    top_view_inds = inds3.reshape(B, N)

    end_points = {
        "view_score": view_score,                    # (B, N, V)
        "grasp_top_view_inds": top_view_inds,        # (B, N)
    }
    # TODO(synk): eval (is_training=False) branch needs generate_grasp_views /
    # batch_viewpoint_params_to_matrix helpers, which are not part of this module.
    return end_points, res_features


def _reference_forward(seed_features, params):
    """Plain-JAX reference for the deterministic part (conv1+relu, conv2)."""
    hp = jax.lax.Precision.HIGHEST
    w1 = params["w1"][:, :, 0]   # (C, C)
    w2 = params["w2"][:, :, 0]   # (V, C)
    h = jnp.maximum(
        jnp.einsum("oc,bcn->bon", w1, seed_features, precision=hp)
        + params["b1"][None, :, None], 0.0)
    s = jnp.einsum("vc,bcn->bvn", w2, h, precision=hp) + params["b2"][None, :, None]
    return h, jnp.transpose(s, (0, 2, 1))


if __name__ == "__main__":
    B, C, N, V = 2, 32, 512, 16   # batch, seed_feature_dim, num_seed, num_view

    key = jax.random.PRNGKey(0)
    k_x, k_w1, k_b1, k_w2, k_b2 = jax.random.split(key, 5)

    seed_features = jax.random.normal(k_x, (B, C, N), dtype=jnp.float32)
    params = {
        "w1": jax.random.normal(k_w1, (C, C, 1), dtype=jnp.float32) * 0.1,  # Conv1d(C, C, 1).weight
        "b1": jax.random.normal(k_b1, (C,), dtype=jnp.float32) * 0.1,
        "w2": jax.random.normal(k_w2, (V, C, 1), dtype=jnp.float32) * 0.1,  # Conv1d(C, V, 1).weight
        "b2": jax.random.normal(k_b2, (V,), dtype=jnp.float32) * 0.1,
    }

    end_points, res_features = approach_net_forward(
        seed_features, params, sample_seed=1234, num_view=V)
    jax.block_until_ready((end_points, res_features))

    # Check the deterministic hot path against a plain-JAX reference.
    res_ref, view_score_ref = _reference_forward(seed_features, params)
    np.testing.assert_allclose(np.asarray(res_features), np.asarray(res_ref),
                               rtol=1e-3, atol=1e-3)
    np.testing.assert_allclose(np.asarray(end_points["view_score"]),
                               np.asarray(view_score_ref), rtol=1e-3, atol=1e-3)

    inds = np.asarray(end_points["grasp_top_view_inds"])
    assert inds.shape == (B, N) and inds.dtype == np.int32
    assert inds.min() >= 0 and inds.max() < V

    print("KERNEL_OK")
</pallas_src>

<mosaic_0001>
module attributes {stable_mosaic.version = 11 : i64} {
  func.func @_approach_kernel(%arg0: i32, %arg1: i32, %arg2: memref<1xi32, #tpu.memory_space<smem>>, %arg3: memref<1x32x512xf32, #tpu.memory_space<vmem>>, %arg4: memref<32x32xf32, #tpu.memory_space<vmem>>, %arg5: memref<32x1xf32, #tpu.memory_space<vmem>>, %arg6: memref<16x32xf32, #tpu.memory_space<vmem>>, %arg7: memref<16x1xf32, #tpu.memory_space<vmem>>, %arg8: memref<1x32x512xf32, #tpu.memory_space<vmem>>, %arg9: memref<1x16x512xf32, #tpu.memory_space<vmem>>, %arg10: memref<1x1x512xi32, #tpu.memory_space<vmem>>) attributes {dimension_semantics = [#tpu.dimension_semantics<parallel>, #tpu.dimension_semantics<parallel>], iteration_bounds = array<i64: 2, 1>, scalar_prefetch = 1 : i64, scratch_operands = 0 : i64, tpu.core_type = #tpu.core_type<tc>, window_params = [{transform_indices = @transform_0, window_bounds = array<i64: 1, 32, 512>}, {pipeline_mode = #tpu.pipeline_mode<synchronous>, transform_indices = @transform_1, window_bounds = array<i64: 32, 32>}, {pipeline_mode = #tpu.pipeline_mode<synchronous>, transform_indices = @transform_2, window_bounds = array<i64: 32, 1>}, {pipeline_mode = #tpu.pipeline_mode<synchronous>, transform_indices = @transform_3, window_bounds = array<i64: 16, 32>}, {pipeline_mode = #tpu.pipeline_mode<synchronous>, transform_indices = @transform_4, window_bounds = array<i64: 16, 1>}, {transform_indices = @transform_5, window_bounds = array<i64: 1, 32, 512>}, {transform_indices = @transform_6, window_bounds = array<i64: 1, 16, 512>}, {transform_indices = @transform_7, window_bounds = array<i64: 1, 1, 512>}]} {
    %c0 = arith.constant 0 : index
    %c0_0 = arith.constant 0 : index
    %c0_1 = arith.constant 0 : index
    %0 = vector.load %arg3[%c0, %c0_0, %c0_1] : memref<1x32x512xf32, #tpu.memory_space<vmem>>, vector<1x32x512xf32>
    %1 = vector.shape_cast %0 : vector<1x32x512xf32> to vector<32x512xf32>
    %c0_2 = arith.constant 0 : index
    %c0_3 = arith.constant 0 : index
    %2 = vector.load %arg4[%c0_2, %c0_3] : memref<32x32xf32, #tpu.memory_space<vmem>>, vector<32x32xf32>
    %cst = arith.constant dense<0.000000e+00> : vector<32x512xf32>
    %3 = tpu.matmul %2, %1, %cst {dimension_numbers = #tpu.dot_dimension_numbers<[1], [0], [0], [1], [0, 0, 1, 1], [], []>} : vector<32x32xf32>, vector<32x512xf32>, vector<32x512xf32> -> vector<32x512xf32>
    %c0_4 = arith.constant 0 : index
    %c0_5 = arith.constant 0 : index
    %4 = vector.load %arg5[%c0_4, %c0_5] : memref<32x1xf32, #tpu.memory_space<vmem>>, vector<32x1xf32>
    %5 = vector.broadcast %4 : vector<32x1xf32> to vector<32x512xf32>
    %6 = arith.addf %3, %5 : vector<32x512xf32>
    %cst_6 = arith.constant 0.000000e+00 : f32
    %7 = vector.broadcast %cst_6 : f32 to vector<32x512xf32>
    %8 = arith.maximumf %6, %7 : vector<32x512xf32>
    %c0_7 = arith.constant 0 : index
    %c0_8 = arith.constant 0 : index
    %c0_9 = arith.constant 0 : index
    %9 = vector.load %arg8[%c0_7, %c0_8, %c0_9] : memref<1x32x512xf32, #tpu.memory_space<vmem>>, vector<1x32x512xf32>
    %10 = vector.shape_cast %9 : vector<1x32x512xf32> to vector<32x512xf32>
    %11 = vector.shape_cast %8 : vector<32x512xf32> to vector<1x32x512xf32>
    tpu.vector_store %arg8[%c0_7, %c0_8, %c0_9], %11 {strides = array<i32>} : memref<1x32x512xf32, #tpu.memory_space<vmem>>, vector<1x32x512xf32>,
    %c0_10 = arith.constant 0 : index
    %c0_11 = arith.constant 0 : index
    %12 = vector.load %arg6[%c0_10, %c0_11] : memref<16x32xf32, #tpu.memory_space<vmem>>, vector<16x32xf32>
    %cst_12 = arith.constant dense<0.000000e+00> : vector<16x512xf32>
    %13 = tpu.matmul %12, %8, %cst_12 {dimension_numbers = #tpu.dot_dimension_numbers<[1], [0], [0], [1], [0, 0, 1, 1], [], []>} : vector<16x32xf32>, vector<32x512xf32>, vector<16x512xf32> -> vector<16x512xf32>
    %c0_13 = arith.constant 0 : index
    %c0_14 = arith.constant 0 : index
    %14 = vector.load %arg7[%c0_13, %c0_14] : memref<16x1xf32, #tpu.memory_space<vmem>>, vector<16x1xf32>
    %15 = vector.broadcast %14 : vector<16x1xf32> to vector<16x512xf32>
    %16 = arith.addf %13, %15 : vector<16x512xf32>
    %c0_15 = arith.constant 0 : index
    %c0_16 = arith.constant 0 : index
    %c0_17 = arith.constant 0 : index
    %17 = vector.load %arg9[%c0_15, %c0_16, %c0_17] : memref<1x16x512xf32, #tpu.memory_space<vmem>>, vector<1x16x512xf32>
    %18 = vector.shape_cast %17 : vector<1x16x512xf32> to vector<16x512xf32>
    %19 = vector.shape_cast %16 : vector<16x512xf32> to vector<1x16x512xf32>
    tpu.vector_store %arg9[%c0_15, %c0_16, %c0_17], %19 {strides = array<i32>} : memref<1x16x512xf32, #tpu.memory_space<vmem>>, vector<1x16x512xf32>,
    %cst_18 = arith.constant dense<0x7F800000> : vector<512xf32>
    %20 = vector.multi_reduction <minimumf>, %16, %cst_18 [0] : vector<16x512xf32> to vector<512xf32>
    %21 = vector.shape_cast %20 : vector<512xf32> to vector<1x512xf32>
    %22 = vector.broadcast %21 : vector<1x512xf32> to vector<16x512xf32>
    %23 = arith.subf %16, %22 : vector<16x512xf32>
    %c1_i32 = arith.constant 1 : i32
    %24 = arith.muli %arg0, %c1_i32 : i32
    %25 = arith.addi %24, %arg1 : i32
    %26 = tpu.iota {dimensions = array<i32: 0>} : vector<16x512xi32>
    %27 = tpu.iota {dimensions = array<i32: 1>} : vector<16x512xi32>
    %c512_i32 = arith.constant 512 : i32
    %28 = arith.muli %25, %c512_i32 : i32
    %29 = vector.broadcast %28 : i32 to vector<16x512xi32>
    %30 = arith.addi %29, %27 : vector<16x512xi32>
    %c16_i32 = arith.constant 16 : i32
    %31 = vector.broadcast %c16_i32 : i32 to vector<16x512xi32>
    %32 = arith.muli %30, %31 : vector<16x512xi32>
    %33 = arith.addi %32, %26 : vector<16x512xi32>
    %c0_19 = arith.constant 0 : index
    %34 = memref.load %arg2[%c0_19] : memref<1xi32, #tpu.memory_space<smem>>
    %c-2073254261_i32 = arith.constant -2073254261 : i32
    %35 = arith.muli %34, %c-2073254261_i32 : i32
    %36 = vector.broadcast %35 : i32 to vector<16x512xi32>
    %37 = arith.xori %33, %36 : vector<16x512xi32>
    %c2146121005_i32 = arith.constant 2146121005 : i32
    %38 = vector.broadcast %c2146121005_i32 : i32 to vector<16x512xi32>
    %39 = arith.muli %37, %38 : vector<16x512xi32>
    %c16_i32_20 = arith.constant 16 : i32
    %40 = vector.broadcast %c16_i32_20 : i32 to vector<16x512xi32>
    %41 = arith.shrsi %39, %40 : vector<16x512xi32>
    %c65535_i32 = arith.constant 65535 : i32
    %42 = vector.broadcast %c65535_i32 : i32 to vector<16x512xi32>
    %43 = arith.andi %41, %42 : vector<16x512xi32>
    %44 = arith.xori %39, %43 : vector<16x512xi32>
    %c8_i32 = arith.constant 8 : i32
    %45 = vector.broadcast %c8_i32 : i32 to vector<16x512xi32>
    %46 = arith.shrsi %44, %45 : vector<16x512xi32>
    %c16777215_i32 = arith.constant 16777215 : i32
    %47 = vector.broadcast %c16777215_i32 : i32 to vector<16x512xi32>
    %48 = arith.andi %46, %47 : vector<16x512xi32>
    %49 = arith.sitofp %48 : vector<16x512xi32> to vector<16x512xf32>
    %cst_21 = arith.constant 5.000000e-01 : f32
    %50 = vector.broadcast %cst_21 : f32 to vector<16x512xf32>
    %51 = arith.addf %49, %50 : vector<16x512xf32>
    %cst_22 = arith.constant 5.96046448E-8 : f32
    %52 = vector.broadcast %cst_22 : f32 to vector<16x512xf32>
    %53 = arith.mulf %51, %52 : vector<16x512xf32>
    %54 = math.log %53 : vector<16x512xf32>
    %cst_23 = arith.constant 0.000000e+00 : f32
    %55 = vector.broadcast %cst_23 : f32 to vector<16x512xf32>
    %56 = arith.subf %55, %54 : vector<16x512xf32>
    %57 = tpu.reciprocal %56 {approx = true} : vector<16x512xf32> -> vector<16x512xf32>
    %58 = arith.mulf %23, %57 : vector<16x512xf32>
    %cst_24 = arith.constant dense<0xFF800000> : vector<512xf32>
    %59 = vector.multi_reduction <maximumf>, %58, %cst_24 [0] : vector<16x512xf32> to vector<512xf32>
    %60 = vector.shape_cast %59 : vector<512xf32> to vector<1x512xf32>
    %61 = vector.broadcast %60 : vector<1x512xf32> to vector<16x512xf32>
    %62 = arith.cmpf oge, %58, %61 : vector<16x512xf32>
    %63 = arith.sitofp %26 : vector<16x512xi32> to vector<16x512xf32>
    %cst_25 = arith.constant 1.600000e+01 : f32
    %64 = vector.broadcast %cst_25 : f32 to vector<16x512xf32>
    %65 = arith.select %62, %63, %64 : vector<16x512xi1>, vector<16x512xf32>
    %cst_26 = arith.constant dense<0x7F800000> : vector<512xf32>
    %66 = vector.multi_reduction <minimumf>, %65, %cst_26 [0] : vector<16x512xf32> to vector<512xf32>
    %67 = vector.shape_cast %66 : vector<512xf32> to vector<1x512xf32>
    %68 = arith.fptosi %67 : vector<1x512xf32> to vector<1x512xi32>
    %c0_27 = arith.constant 0 : index
    %c0_28 = arith.constant 0 : index
    %c0_29 = arith.constant 0 : index
    %69 = vector.load %arg10[%c0_27, %c0_28, %c0_29] : memref<1x1x512xi32, #tpu.memory_space<vmem>>, vector<1x1x512xi32>
    %70 = vector.shape_cast %69 : vector<1x1x512xi32> to vector<1x512xi32>
    %71 = vector.shape_cast %68 : vector<1x512xi32> to vector<1x1x512xi32>
    tpu.vector_store %arg10[%c0_27, %c0_28, %c0_29], %71 {strides = array<i32>} : memref<1x1x512xi32, #tpu.memory_space<vmem>>, vector<1x1x512xi32>,
    return
  }
  func.func @transform_0(%arg0: i32, %arg1: i32, %arg2: memref<1xi32, #tpu.memory_space<smem>>) -> (i32, i32, i32) {
    %c0_i32 = arith.constant 0 : i32
    %c0_i32_0 = arith.constant 0 : i32
    return %arg0, %c0_i32, %arg1 : i32, i32, i32
  }
  func.func @transform_1(%arg0: i32, %arg1: i32, %arg2: memref<1xi32, #tpu.memory_space<smem>>) -> (i32, i32) {
    %c0_i32 = arith.constant 0 : i32
    %c0_i32_0 = arith.constant 0 : i32
    %c0_i32_1 = arith.constant 0 : i32
    return %c0_i32, %c0_i32_0 : i32, i32
  }
  func.func @transform_2(%arg0: i32, %arg1: i32, %arg2: memref<1xi32, #tpu.memory_space<smem>>) -> (i32, i32) {
    %c0_i32 = arith.constant 0 : i32
    %c0_i32_0 = arith.constant 0 : i32
    %c0_i32_1 = arith.constant 0 : i32
    return %c0_i32, %c0_i32_0 : i32, i32
  }
  func.func @transform_3(%arg0: i32, %arg1: i32, %arg2: memref<1xi32, #tpu.memory_space<smem>>) -> (i32, i32) {
    %c0_i32 = arith.constant 0 : i32
    %c0_i32_0 = arith.constant 0 : i32
    %c0_i32_1 = arith.constant 0 : i32
    return %c0_i32, %c0_i32_0 : i32, i32
  }
  func.func @transform_4(%arg0: i32, %arg1: i32, %arg2: memref<1xi32, #tpu.memory_space<smem>>) -> (i32, i32) {
    %c0_i32 = arith.constant 0 : i32
    %c0_i32_0 = arith.constant 0 : i32
    %c0_i32_1 = arith.constant 0 : i32
    return %c0_i32, %c0_i32_0 : i32, i32
  }
  func.func @transform_5(%arg0: i32, %arg1: i32, %arg2: memref<1xi32, #tpu.memory_space<smem>>) -> (i32, i32, i32) {
    %c0_i32 = arith.constant 0 : i32
    %c0_i32_0 = arith.constant 0 : i32
    return %arg0, %c0_i32, %arg1 : i32, i32, i32
  }
  func.func @transform_6(%arg0: i32, %arg1: i32, %arg2: memref<1xi32, #tpu.memory_space<smem>>) -> (i32, i32, i32) {
    %c0_i32 = arith.constant 0 : i32
    %c0_i32_0 = arith.constant 0 : i32
    return %arg0, %c0_i32, %arg1 : i32, i32, i32
  }
  func.func @transform_7(%arg0: i32, %arg1: i32, %arg2: memref<1xi32, #tpu.memory_space<smem>>) -> (i32, i32, i32) {
    %c0_i32 = arith.constant 0 : i32
    %c0_i32_0 = arith.constant 0 : i32
    return %arg0, %c0_i32, %arg1 : i32, i32, i32
  }
}

</mosaic_0001>

<llo_original>
// kernel: tpu_custom_call.1
$region0: #{tpu_custom_call.1}
  #allocation0 [shape = 'u32[]', space=smem, size = 0x4, offset = 0x4, fixed_abs, tag = 'smem constant byte address 0x4 - core index']
  #allocation1 [shape = 'u32[144,128]{1,0:T(1,128)}', space=vmem, size = 0x12000, scoped, tag = 'internal scratch']
  #allocation2 [shape = 's32[1]{0}', space=sflag, size = 0x4, scoped, tag = 'scoped memory for tpu_custom_call.1']
  #allocation3 [shape = 's32[1]{0:T(128)S(6)}', space=smem, size = 0x200, scoped, tag = 'prefetched SMEM operand 0']
  %s0 = inlined_call_operand.<no memory space> [shape: s32[1], index: 0, kind: input, shape index: {}]
  %s1 = inlined_call_operand.hbm [shape: f32[2,32,512], index: 1, kind: input, shape index: {}]
  %s2 = inlined_call_operand.vmem [shape: f32[32,32], index: 2, kind: input, shape index: {}]
  %s3 = inlined_call_operand.vmem [shape: f32[32,1], index: 3, kind: input, shape index: {}]
  %s4 = inlined_call_operand.vmem [shape: f32[16,32], index: 4, kind: input, shape index: {}]
  %s5 = inlined_call_operand.vmem [shape: f32[16,1], index: 5, kind: input, shape index: {}]
  %s6 = inlined_call_operand.hbm [shape: f32[2,32,512], index: 6, kind: output, shape index: {0}]
  %s7 = inlined_call_operand.hbm [shape: f32[2,16,512], index: 7, kind: output, shape index: {1}]
  %s8 = inlined_call_operand.hbm [shape: s32[2,1,512], index: 8, kind: output, shape index: {2}]
  %9 = xla_tuple %s6, %s7, %s8
  %s10 = sld [smem:[#allocation0]]
  $region73: #{tpu_custom_call.1} parent=0
    _
  %s12 = ssub.s32 1, %s10
  %s13 = scalar_select 0, %s12, %s10
  %14 = sst [smem:[#allocation3]] %s0
  $region1: #{tpu_custom_call.1} parent=0
    #allocation4 [shape = 'u8[131072]{0}', space=vmem, size = 0x20000, scoped, tag = 'input window, operand 1']
    #allocation5 [shape = 's32[2]{0}', space=sflag, size = 0x8, scoped, tag = 'scoped memory for tpu_custom_call.1']
    #allocation6 [shape = 's32[2]{0}', space=sflag, size = 0x8, scoped, tag = 'scoped memory for tpu_custom_call.1']
    #allocation7 [shape = 'u8[131072]{0}', space=vmem, size = 0x20000, scoped, tag = 'output window, operand 0']
    #allocation8 [shape = 'u8[65536]{0}', space=vmem, size = 0x10000, scoped, tag = 'output window, operand 1']
    #allocation9 [shape = 's32[2]{0}', space=sflag, size = 0x8, scoped, tag = 'scoped memory for tpu_custom_call.1']
    #allocation10 [shape = 'u8[4096]{0}', space=vmem, size = 0x1000, scoped, tag = 'output window, operand 2']
    %15 = vsyncpa [#allocation5], 0
    %s16 = scalar_lea.sflag [#allocation5], 1
    %17 = vsyncpa %s16, 0
    %18 = vsyncpa [#allocation6], 0
    %s19 = scalar_lea.sflag [#allocation6], 1
    %20 = vsyncpa %s19, 0
    %21 = vsyncpa [#allocation9], 0
    %s22 = scalar_lea.sflag [#allocation9], 1
    %23 = vsyncpa %s22, 0
    loop: start=0, step=1, limit=4
    $region2: #{tpu_custom_call.1} parent=1 // loop_pre_header
      _
    $region3: #{tpu_custom_call.1} parent=1 // loop_header
      %s25 = sphi 0, %s29
      %p26 = scmp.ge.s32.totalorder %s25, 4
      %s32 = sphi 0, %s44
      %s33 = sphi 0, %s40
      %s34 = sphi 0, %s32
      %s35 = sphi 0, %s33
      %s36 = sphi 0, %s34
      %s37 = sphi 0, %s35
      %s49 = sphi 0, %s51
      %s52 = sphi 0, %s49
      %s53 = sphi 0, %s52
      %s69 = sphi 0, %s53
      %s73 = sphi 0, %s73
      %s75 = sphi 0, %s73
      %s76 = sphi 0, %s75
      %s90 = sphi 0, %s76
      %s94 = sphi 0, %s94
      %s96 = sphi 0, %s94
      %s97 = sphi 0, %s96
      %s111 = sphi 0, %s97
      %s115 = sphi 0, %s115
      %s117 = sphi 0, %s115
      %s118 = sphi 0, %s117
      %s132 = sphi 0, %s118
      %s136 = sphi 0, %s136
      %s138 = sphi 0, %s136
      %s139 = sphi 0, %s138
      %s153 = sphi 0, %s139
      %s161 = sphi 0, %s163
      %s164 = sphi 0, %s161
      %s165 = sphi 0, %s164
      %s181 = sphi 0, %s165
      %s189 = sphi 0, %s191
      %s192 = sphi 0, %s189
      %s193 = sphi 0, %s192
      %s209 = sphi 0, %s193
      %s217 = sphi 0, %s219
      %s220 = sphi 0, %s217
      %s221 = sphi 0, %s220
      %s237 = sphi 0, %s221
    $region4: #{tpu_custom_call.1} parent=1 // loop_header_branch
      %28 = sbr.rel (%p26) target = $region8
    $region5: #{tpu_custom_call.1} parent=1 // loop_body
      %s30 = ssub.s32 %s25, 1
      %s31 = ssub.s32 %s25, 2
      %s38 = sadd.s32 1, %s33
      %p39 = scmp.ge.s32.totalorder %s38, 1
      %s40 = scalar_select %p39, 0, %s38
      %s41 = sadd.s32 1, %s32
      %s42 = scalar_select %p39, %s41, %s32
      %p43 = scmp.ge.s32.totalorder %s42, 2
      %s44 = scalar_select %p43, 0, %s42
      %s45 = ssub.s32 %s32, %s44
      %s46 = ssub.s32 %s33, %s40
      %s47 = sor.u32 %s45, %s46
      %p48 = scmp.eq.s32.totalorder %s47, 0
      %s50 = sadd.s32 %s49, 1
      %s51 = scalar_select %p48, %s49, %s50
      %p54 = pneg %p48
      %p55 = scmp.eq.s32.totalorder %s25, 1
      %p56 = por %p54, %p55
      %p57 = scmp.ne.s32.totalorder %s49, %s52
      %p58 = scmp.eq.s32.totalorder %s25, 0
      %p59 = por %p57, %p58
      %p60 = scmp.ne.s32.totalorder %s49, %s52
      %p61 = scmp.eq.s32.totalorder %s30, 1
      %p62 = por %p60, %p61
      %p63 = scmp.ne.s32.totalorder %s52, %s53
      %p64 = scmp.eq.s32.totalorder %s30, 0
      %p65 = por %p63, %p64
      %p66 = scmp.ne.s32.totalorder %s52, %s53
      %p67 = scmp.eq.s32.totalorder %s31, 1
      %p68 = por %p66, %p67
      %p70 = scmp.ne.s32.totalorder %s53, %s69
      %p71 = scmp.eq.s32.totalorder %s31, 0
      %p72 = por %p70, %p71
      %s74 = sadd.s32 %s73, 1
      %p77 = scmp.eq.s32.totalorder %s25, 1
      %p78 = scmp.ne.s32.totalorder %s73, %s75
      %p79 = scmp.eq.s32.totalorder %s25, 0
      %p80 = por %p78, %p79
      %p81 = scmp.ne.s32.totalorder %s73, %s75
      %p82 = scmp.eq.s32.totalorder %s30, 1
      %p83 = por %p81, %p82
      %p84 = scmp.ne.s32.totalorder %s75, %s76
      %p85 = scmp.eq.s32.totalorder %s30, 0
      %p86 = por %p84, %p85
      %p87 = scmp.ne.s32.totalorder %s75, %s76
      %p88 = scmp.eq.s32.totalorder %s31, 1
      %p89 = por %p87, %p88
      %p91 = scmp.ne.s32.totalorder %s76, %s90
      %p92 = scmp.eq.s32.totalorder %s31, 0
      %p93 = por %p91, %p92
      %s95 = sadd.s32 %s94, 1
      %p98 = scmp.eq.s32.totalorder %s25, 1
      %p99 = scmp.ne.s32.totalorder %s94, %s96
      %p100 = scmp.eq.s32.totalorder %s25, 0
      %p101 = por %p99, %p100
      %p102 = scmp.ne.s32.totalorder %s94, %s96
      %p103 = scmp.eq.s32.totalorder %s30, 1
      %p104 = por %p102, %p103
      %p105 = scmp.ne.s32.totalorder %s96, %s97
      %p106 = scmp.eq.s32.totalorder %s30, 0
      %p107 = por %p105, %p106
      %p108 = scmp.ne.s32.totalorder %s96, %s97
      %p109 = scmp.eq.s32.totalorder %s31, 1
      %p110 = por %p108, %p109
      %p112 = scmp.ne.s32.totalorder %s97, %s111
      %p113 = scmp.eq.s32.totalorder %s31, 0
      %p114 = por %p112, %p113
      %s116 = sadd.s32 %s115, 1
      %p119 = scmp.eq.s32.totalorder %s25, 1
      %p120 = scmp.ne.s32.totalorder %s115, %s117
      %p121 = scmp.eq.s32.totalorder %s25, 0
      %p122 = por %p120, %p121
      %p123 = scmp.ne.s32.totalorder %s115, %s117
      %p124 = scmp.eq.s32.totalorder %s30, 1
      %p125 = por %p123, %p124
      %p126 = scmp.ne.s32.totalorder %s117, %s118
      %p127 = scmp.eq.s32.totalorder %s30, 0
      %p128 = por %p126, %p127
      %p129 = scmp.ne.s32.totalorder %s117, %s118
      %p130 = scmp.eq.s32.totalorder %s31, 1
      %p131 = por %p129, %p130
      %p133 = scmp.ne.s32.totalorder %s118, %s132
      %p134 = scmp.eq.s32.totalorder %s31, 0
      %p135 = por %p133, %p134
      %s137 = sadd.s32 %s136, 1
      %p140 = scmp.eq.s32.totalorder %s25, 1
      %p141 = scmp.ne.s32.totalorder %s136, %s138
      %p142 = scmp.eq.s32.totalorder %s25, 0
      %p143 = por %p141, %p142
      %p144 = scmp.ne.s32.totalorder %s136, %s138
      %p145 = scmp.eq.s32.totalorder %s30, 1
      %p146 = por %p144, %p145
      %p147 = scmp.ne.s32.totalorder %s138, %s139
      %p148 = scmp.eq.s32.totalorder %s30, 0
      %p149 = por %p147, %p148
      %p150 = scmp.ne.s32.totalorder %s138, %s139
      %p151 = scmp.eq.s32.totalorder %s31, 1
      %p152 = por %p150, %p151
      %p154 = scmp.ne.s32.totalorder %s139, %s153
      %p155 = scmp.eq.s32.totalorder %s31, 0
      %p156 = por %p154, %p155
      %s157 = ssub.s32 %s32, %s44
      %s158 = ssub.s32 %s33, %s40
      %s159 = sor.u32 %s157, %s158
      %p160 = scmp.eq.s32.totalorder %s159, 0
      %s162 = sadd.s32 %s161, 1
      %s163 = scalar_select %p160, %s161, %s162
      %p166 = pneg %p160
      %p167 = scmp.eq.s32.totalorder %s25, 1
      %p168 = por %p166, %p167
      %p169 = scmp.ne.s32.totalorder %s161, %s164
      %p170 = scmp.eq.s32.totalorder %s25, 0
      %p171 = por %p169, %p170
      %p172 = scmp.ne.s32.totalorder %s161, %s164
      %p173 = scmp.eq.s32.totalorder %s30, 1
      %p174 = por %p172, %p173
      %p175 = scmp.ne.s32.totalorder %s164, %s165
      %p176 = scmp.eq.s32.totalorder %s30, 0
      %p177 = por %p175, %p176
      %p178 = scmp.ne.s32.totalorder %s164, %s165
      %p179 = scmp.eq.s32.totalorder %s31, 1
      %p180 = por %p178, %p179
      %p182 = scmp.ne.s32.totalorder %s165, %s181
      %p183 = scmp.eq.s32.totalorder %s31, 0
      %p184 = por %p182, %p183
      %s185 = ssub.s32 %s32, %s44
      %s186 = ssub.s32 %s33, %s40
      %s187 = sor.u32 %s185, %s186
      %p188 = scmp.eq.s32.totalorder %s187, 0
      %s190 = sadd.s32 %s189, 1
      %s191 = scalar_select %p188, %s189, %s190
      %p194 = pneg %p188
      %p195 = scmp.eq.s32.totalorder %s25, 1
      %p196 = por %p194, %p195
      %p197 = scmp.ne.s32.totalorder %s189, %s192
      %p198 = scmp.eq.s32.totalorder %s25, 0
      %p199 = por %p197, %p198
      %p200 = scmp.ne.s32.totalorder %s189, %s192
      %p201 = scmp.eq.s32.totalorder %s30, 1
      %p202 = por %p200, %p201
      %p203 = scmp.ne.s32.totalorder %s192, %s193
      %p204 = scmp.eq.s32.totalorder %s30, 0
      %p205 = por %p203, %p204
      %p206 = scmp.ne.s32.totalorder %s192, %s193
      %p207 = scmp.eq.s32.totalorder %s31, 1
      %p208 = por %p206, %p207
      %p210 = scmp.ne.s32.totalorder %s193, %s209
      %p211 = scmp.eq.s32.totalorder %s31, 0
      %p212 = por %p210, %p211
      %s213 = ssub.s32 %s32, %s44
      %s214 = ssub.s32 %s33, %s40
      %s215 = sor.u32 %s213, %s214
      %p216 = scmp.eq.s32.totalorder %s215, 0
      %s218 = sadd.s32 %s217, 1
      %s219 = scalar_select %p216, %s217, %s218
      %p222 = pneg %p216
      %p223 = scmp.eq.s32.totalorder %s25, 1
      %p224 = por %p222, %p223
      %p225 = scmp.ne.s32.totalorder %s217, %s220
      %p226 = scmp.eq.s32.totalorder %s25, 0
      %p227 = por %p225, %p226
      %p228 = scmp.ne.s32.totalorder %s217, %s220
      %p229 = scmp.eq.s32.totalorder %s30, 1
      %p230 = por %p228, %p229
      %p231 = scmp.ne.s32.totalorder %s220, %s221
      %p232 = scmp.eq.s32.totalorder %s30, 0
      %p233 = por %p231, %p232
      %p234 = scmp.ne.s32.totalorder %s220, %s221
      %p235 = scmp.eq.s32.totalorder %s31, 1
      %p236 = por %p234, %p235
      %p238 = scmp.ne.s32.totalorder %s221, %s237
      %p239 = scmp.eq.s32.totalorder %s31, 0
      %p240 = por %p238, %p239
      %p241 = scmp.le.s32.totalorder 1, %s25
      %p242 = scmp.lt.s32.totalorder %s25, 3
      %p243 = pnand %p241, %p242
      %p244 = pneg %p243
      // Predicated region
      $region9: #{tpu_custom_call.1} parent=5 // pred_check
        _
      $region10: #{tpu_custom_call.1} parent=5 // pred_check_branch
        %246 = sbr.rel (%p243) target = $region12
      $region11: #{tpu_custom_call.1} parent=5 // pred_region
        %s247 = ssub.s32 %s25, 1
        // Predicated region
        $region13: #{tpu_custom_call.1} parent=11 // pred_check
          %p248 = pneg %p86
        $region14: #{tpu_custom_call.1} parent=11 // pred_check_branch
          %250 = sbr.rel (%p248) target = $region16
        $region15: #{tpu_custom_call.1} parent=11 // pred_region
          _
        $region16: #{tpu_custom_call.1} parent=11 // pred_fallthru
          _
        // Predicated region
        $region17: #{tpu_custom_call.1} parent=11 // pred_check
          %p251 = pneg %p107
        $region18: #{tpu_custom_call.1} parent=11 // pred_check_branch
          %253 = sbr.rel (%p251) target = $region20
        $region19: #{tpu_custom_call.1} parent=11 // pred_region
          _
        $region20: #{tpu_custom_call.1} parent=11 // pred_fallthru
          _
        // Predicated region
        $region21: #{tpu_custom_call.1} parent=11 // pred_check
          %p254 = pneg %p128
        $region22: #{tpu_custom_call.1} parent=11 // pred_check_branch
          %256 = sbr.rel (%p254) target = $region24
        $region23: #{tpu_custom_call.1} parent=11 // pred_region
          _
        $region24: #{tpu_custom_call.1} parent=11 // pred_fallthru
          _
        // Predicated region
        $region25: #{tpu_custom_call.1} parent=11 // pred_check
          %p257 = pneg %p149
        $region26: #{tpu_custom_call.1} parent=11 // pred_check_branch
          %259 = sbr.rel (%p257) target = $region28
        $region27: #{tpu_custom_call.1} parent=11 // pred_region
          _
        $region28: #{tpu_custom_call.1} parent=11 // pred_fallthru
          _
      $region12: #{tpu_custom_call.1} parent=5 // pred_fallthru
        _
      %p260 = scmp.lt.s32.totalorder %s25, 2
      // Predicated region
      $region29: #{tpu_custom_call.1} parent=5 // pred_check
        %p261 = pneg %p260
      $region30: #{tpu_custom_call.1} parent=5 // pred_check_branch
        %263 = sbr.rel (%p261) target = $region32
      $region31: #{tpu_custom_call.1} parent=5 // pred_region
        // Predicated region
        $region33: #{tpu_custom_call.1} parent=31 // pred_check
          %p264 = pneg %p59
        $region34: #{tpu_custom_call.1} parent=31 // pred_check_branch
          %266 = sbr.rel (%p264) target = $region36
        $region35: #{tpu_custom_call.1} parent=31 // pred_region
          %s267 = sand.u32 %s49, 1
          %s268 = scalar_lea.sflag [#allocation5], %s267
          %s269 = sand.u32 %s49, 1
          %s270 = smul.addr %s269, 128
          %s271 = scalar_lea.vmem [#allocation4], %s270
          %s272 = smul.u32 4, %s33
          %s274 = ssub.s32 2048, 2048
          %275 = vsyncadd %s268, %s274
          %s276 = smul.addr %s32, 16
          %s277 = sadd.s32 %s272, %s276
          %s278 = smul.addr %s277, 128
          %s279 = scalar_lea.hbm %s1, %s278
          %s280 = sshll.u32 %s271, 4
          %s281 = int_to_ptr.vmem [resolvable:$true] %s280
          %286 = dma.hbm_to_vmem [thread:$0]  %s279, 2048, %s281, %s268, 512, 512, 32
        $region36: #{tpu_custom_call.1} parent=31 // pred_fallthru
          _
      $region32: #{tpu_custom_call.1} parent=5 // pred_fallthru
        _
      %p287 = scmp.le.s32.totalorder 1, %s25
      %p288 = scmp.lt.s32.totalorder %s25, 3
      %p289 = pnand %p287, %p288
      %p290 = pneg %p289
      // Predicated region
      $region37: #{tpu_custom_call.1} parent=5 // pred_check
        _
      $region38: #{tpu_custom_call.1} parent=5 // pred_check_branch
        %292 = sbr.rel (%p289) target = $region40
      $region39: #{tpu_custom_call.1} parent=5 // pred_region
        %s293 = ssub.s32 %s25, 1
        %s294 = sand.u32 %s52, 1
        %s295 = scalar_lea.sflag [#allocation5], %s294
        %s296 = sand.u32 %s52, 1
        %s297 = smul.addr %s296, 128
        %s298 = scalar_lea.vmem [#allocation4], %s297
        // Predicated region
        $region41: #{tpu_custom_call.1} parent=39 // pred_check
          %p299 = pneg %p65
        $region42: #{tpu_custom_call.1} parent=39 // pred_check_branch
          %301 = sbr.rel (%p299) target = $region44
        $region43: #{tpu_custom_call.1} parent=39 // pred_region
          %302 = dma.done %s295, 2048
        $region44: #{tpu_custom_call.1} parent=39 // pred_fallthru
          _
        %s303 = sand.u32 %s52, 1
        %s304 = scalar_lea.sflag [#allocation5], %s303
        %s305 = sand.u32 %s52, 1
        %s306 = smul.addr %s305, 128
        %s307 = scalar_lea.vmem [#allocation4], %s306
        %p308 = pneg %p65
        %p309 = pneg %p62
        %p310 = pneg %p86
        %p311 = pneg %p83
        %p312 = pneg %p107
        %p313 = pneg %p104
        %p314 = pneg %p128
        %p315 = pneg %p125
        %p316 = pneg %p149
        %p317 = pneg %p146
        %p318 = pneg %p177
        %p319 = pneg %p174
        %s320 = sand.u32 %s164, 1
        %s321 = scalar_lea.sflag [#allocation6], %s320
        %s322 = sand.u32 %s164, 1
        %s323 = smul.addr %s322, 128
        %s324 = scalar_lea.vmem [#allocation7], %s323
        %p325 = pneg %p205
        %p326 = pneg %p202
        %s327 = sand.u32 %s30, 1
        %s328 = scalar_lea.sflag [#allocation9], %s327
        %s329 = sand.u32 %s192, 1
        %s330 = smul.addr %s329, 64
        %s331 = scalar_lea.vmem [#allocation8], %s330
        %p332 = pneg %p233
        %p333 = pneg %p230
        %s334 = sand.u32 %s30, 1
        %s335 = scalar_lea.sflag [#allocation9], %s334
        %s336 = sand.u32 %s220, 1
        %s337 = smul.addr %s336, 4
        %s338 = scalar_lea.vmem [#allocation10], %s337
        %s339 = smul.u32 4, %s35
        %s340 = smul.u32 4, %s35
        %s341 = smul.u32 4, %s35
        %s342 = smul.u32 4, %s35
        %v343 = vld [vmem:[%s298] sm:$0xff]
        %v344 = vld [vmem:[%s298 + $0x8] sm:$0xff]
        %v345 = vld [vmem:[%s298 + $0x10] sm:$0xff]
        %v346 = vld [vmem:[%s298 + $0x18] sm:$0xff]
        %v347 = vld [vmem:[%s298 + $0x20] sm:$0xff]
        %v348 = vld [vmem:[%s298 + $0x28] sm:$0xff]
        %v349 = vld [vmem:[%s298 + $0x30] sm:$0xff]
        %v350 = vld [vmem:[%s298 + $0x38] sm:$0xff]
        %v351 = vld [vmem:[%s298 + $0x40] sm:$0xff]
        %v352 = vld [vmem:[%s298 + $0x48] sm:$0xff]
        %v353 = vld [vmem:[%s298 + $0x50] sm:$0xff]
        %v354 = vld [vmem:[%s298 + $0x58] sm:$0xff]
        %v355 = vld [vmem:[%s298 + $0x60] sm:$0xff]
        %v356 = vld [vmem:[%s298 + $0x68] sm:$0xff]
        %v357 = vld [vmem:[%s298 + $0x70] sm:$0xff]
        %v358 = vld [vmem:[%s298 + $0x78] sm:$0xff]
        %v359 = vld [vmem:[%s2] sm:$0xff]
        %v360 = vld [vmem:[%s2 + $0x8] sm:$0xff]
        %v361 = vld [vmem:[%s2 + $0x10] sm:$0xff]
        %v362 = vld [vmem:[%s2 + $0x18] sm:$0xff]
        %v363 = vld [vmem:[%s3] sm:$0xff]
        %v364 = vld [vmem:[%s3 + $0x8] sm:$0xff]
        %v365 = vld [vmem:[%s3 + $0x10] sm:$0xff]
        %v366 = vld [vmem:[%s3 + $0x18] sm:$0xff]
        %368 = vset.pattern.permute.xlu0 0
        %369 = vperm.xlu0 %368, %v363
        %v370 = vpop.permute.xlu0 %369
        %373 = vset.pattern.permute.xlu0 0
        %374 = vperm.xlu0 %373, %v364
        %v375 = vpop.permute.xlu0 %374
        %378 = vset.pattern.permute.xlu0 0
        %379 = vperm.xlu0 %378, %v365
        %v380 = vpop.permute.xlu0 %379
        %383 = vset.pattern.permute.xlu0 0
        %384 = vperm.xlu0 %383, %v366
        %v385 = vpop.permute.xlu0 %384
        %vm387 = vcmask 261120
        %v389 = vsel %vm387, %v359, 0
        %v392 = vsel %vm387, %v360, 0
        %v395 = vsel %vm387, %v361, 0
        %v398 = vsel %vm387, %v362, 0
        %400 = vmatprep.subr.mxu0 0.0
        %401 = vmatpush1.msra.mxu0 0.0
        %402 = vmatprep.subr.mxu0 0.0
        %403 = vmatpush1.msra.mxu0 0.0
        %404 = vmatprep.subr.mxu0 0.0
        %405 = vmatpush1.msra.mxu0 0.0
        %406 = vmatprep.subr.mxu0 0.0
        %407 = vmatpush1.msra.mxu0 0.0
        %408 = vmatprep.subr.mxu0 0.0
        %409 = vmatpush1.msra.mxu0 0.0
        %410 = vmatprep.subr.mxu0 0.0
        %411 = vmatpush1.msra.mxu0 0.0
        %412 = vmatprep.subr.mxu0 0.0
        %413 = vmatpush1.msra.mxu0 0.0
        %414 = vmatprep.subr.mxu0 0.0
        %415 = vmatpush1.msra.mxu0 0.0
        %416 = vmatprep.subr.mxu0 0.0
        %417 = vmatpush1.msra.mxu0 0.0
        %418 = vmatprep.subr.mxu0 0.0
        %419 = vmatpush1.msra.mxu0 0.0
        %420 = vmatprep.subr.mxu0 0.0
        %421 = vmatpush1.msra.mxu0 0.0
        %422 = vmatprep.subr.mxu0 0.0
        %423 = vmatpush1.msra.mxu0 0.0
        %424 = vmatprep.subr.mxu0 %v356
        %425 = vmatpush1.msra.mxu0 %v355
        %426 = vmatprep.subr.mxu0 %v352
        %427 = vmatpush1.msra.mxu0 %v351
        %428 = vmatprep.subr.mxu0 %v348
        %429 = vmatpush1.msra.mxu0 %v347
        %430 = vmatprep.subr.mxu0 %v344
        %431 = vmatpush1.msra.mxu0 %v343
        %432 = vmatprep.subr.mxu0 0.0
        %433 = vmatpush2.msra.mxu0 0.0
        %434 = vmatprep.subr.mxu0 0.0
        %435 = vmatpush2.msra.mxu0 0.0
        %436 = vmatprep.subr.mxu0 0.0
        %437 = vmatpush2.msra.mxu0 0.0
        %438 = vmatprep.subr.mxu0 0.0
        %439 = vmatpush2.msra.mxu0 0.0
        %440 = vmatprep.subr.mxu0 0.0
        %441 = vmatpush2.msra.mxu0 0.0
        %442 = vmatprep.subr.mxu0 0.0
        %443 = vmatpush2.msra.mxu0 0.0
        %444 = vmatprep.subr.mxu0 0.0
        %445 = vmatpush2.msra.mxu0 0.0
        %446 = vmatprep.subr.mxu0 0.0
        %447 = vmatpush2.msra.mxu0 0.0
        %448 = vmatprep.subr.mxu0 0.0
        %449 = vmatpush2.msra.mxu0 0.0
        %450 = vmatprep.subr.mxu0 0.0
        %451 = vmatpush2.msra.mxu0 0.0
        %452 = vmatprep.subr.mxu0 0.0
        %453 = vmatpush2.msra.mxu0 0.0
        %454 = vmatprep.subr.mxu0 0.0
        %455 = vmatpush2.msra.mxu0 0.0
        %456 = vmatprep.subr.mxu0 0.0
        %457 = vmatpush2.msra.mxu0 0.0
        %458 = vmatprep.subr.mxu0 0.0
        %459 = vmatpush2.msra.mxu0 0.0
        %460 = vmatprep.subr.mxu0 0.0
        %461 = vmatpush2.msra.mxu0 0.0
        %462 = vmatprep.subr.mxu0 0.0
        %463 = vmatpush2.msra.mxu0 0.0
        %464 = vmatprep.mubr.f32.mxu0 0.0
        %465 = vmatmul.mubr.f32.gmra.mxu0 %v389
        %v466 = vpop.f32.mrf.mxu0
        %v467 = vadd.f32 %v370, %v466
        %v468 = vpop.f32.mrf.mxu0
        %v469 = vadd.f32 %v370, %v468
        %470 = vmatprep.mubr.f32.mxu0 0.0
        %471 = vmatmul.mubr.f32.gmra.mxu0 %v392
        %v472 = vpop.f32.mrf.mxu0
        %v473 = vadd.f32 %v375, %v472
        %v474 = vpop.f32.mrf.mxu0
        %v475 = vadd.f32 %v375, %v474
        %476 = vmatprep.mubr.f32.mxu0 0.0
        %477 = vmatmul.mubr.f32.gmra.mxu0 %v395
        %v478 = vpop.f32.mrf.mxu0
        %v479 = vadd.f32 %v380, %v478
        %v480 = vpop.f32.mrf.mxu0
        %v481 = vadd.f32 %v380, %v480
        %482 = vmatprep.mubr.f32.mxu0 0.0
        %483 = vmatmul.mubr.f32.gmra.mxu0 %v398
        %v484 = vpop.f32.mrf.mxu0
        %v485 = vadd.f32 %v385, %v484
        %v486 = vpop.f32.mrf.mxu0
        %v487 = vadd.f32 %v385, %v486
        %488 = vdwg.mxu0
        %489 = vmatprep.subr.mxu0 0.0
        %490 = vmatpush1.msra.mxu0 0.0
        %491 = vmatprep.subr.mxu0 0.0
        %492 = vmatpush1.msra.mxu0 0.0
        %493 = vmatprep.subr.mxu0 0.0
        %494 = vmatpush1.msra.mxu0 0.0
        %495 = vmatprep.subr.mxu0 0.0
        %496 = vmatpush1.msra.mxu0 0.0
        %497 = vmatprep.subr.mxu0 0.0
        %498 = vmatpush1.msra.mxu0 0.0
        %499 = vmatprep.subr.mxu0 0.0
        %500 = vmatpush1.msra.mxu0 0.0
        %501 = vmatprep.subr.mxu0 0.0
        %502 = vmatpush1.msra.mxu0 0.0
        %503 = vmatprep.subr.mxu0 0.0
        %504 = vmatpush1.msra.mxu0 0.0
        %505 = vmatprep.subr.mxu0 0.0
        %506 = vmatpush1.msra.mxu0 0.0
        %507 = vmatprep.subr.mxu0 0.0
        %508 = vmatpush1.msra.mxu0 0.0
        %509 = vmatprep.subr.mxu0 0.0
        %510 = vmatpush1.msra.mxu0 0.0
        %511 = vmatprep.subr.mxu0 0.0
        %512 = vmatpush1.msra.mxu0 0.0
        %513 = vmatprep.subr.mxu0 %v358
        %514 = vmatpush1.msra.mxu0 %v357
        %515 = vmatprep.subr.mxu0 %v354
        %516 = vmatpush1.msra.mxu0 %v353
        %517 = vmatprep.subr.mxu0 %v350
        %518 = vmatpush1.msra.mxu0 %v349
        %519 = vmatprep.subr.mxu0 %v346
        %520 = vmatpush1.msra.mxu0 %v345
        %521 = vmatprep.subr.mxu0 0.0
        %522 = vmatpush2.msra.mxu0 0.0
        %523 = vmatprep.subr.mxu0 0.0
        %524 = vmatpush2.msra.mxu0 0.0
        %525 = vmatprep.subr.mxu0 0.0
        %526 = vmatpush2.msra.mxu0 0.0
        %527 = vmatprep.subr.mxu0 0.0
        %528 = vmatpush2.msra.mxu0 0.0
        %529 = vmatprep.subr.mxu0 0.0
        %530 = vmatpush2.msra.mxu0 0.0
        %531 = vmatprep.subr.mxu0 0.0
        %532 = vmatpush2.msra.mxu0 0.0
        %533 = vmatprep.subr.mxu0 0.0
        %534 = vmatpush2.msra.mxu0 0.0
        %535 = vmatprep.subr.mxu0 0.0
        %536 = vmatpush2.msra.mxu0 0.0
        %537 = vmatprep.subr.mxu0 0.0
        %538 = vmatpush2.msra.mxu0 0.0
        %539 = vmatprep.subr.mxu0 0.0
        %540 = vmatpush2.msra.mxu0 0.0
        %541 = vmatprep.subr.mxu0 0.0
        %542 = vmatpush2.msra.mxu0 0.0
        %543 = vmatprep.subr.mxu0 0.0
        %544 = vmatpush2.msra.mxu0 0.0
        %545 = vmatprep.subr.mxu0 0.0
        %546 = vmatpush2.msra.mxu0 0.0
        %547 = vmatprep.subr.mxu0 0.0
        %548 = vmatpush2.msra.mxu0 0.0
        %549 = vmatprep.subr.mxu0 0.0
        %550 = vmatpush2.msra.mxu0 0.0
        %551 = vmatprep.subr.mxu0 0.0
        %552 = vmatpush2.msra.mxu0 0.0
        %553 = vmatprep.mubr.f32.mxu0 0.0
        %554 = vmatmul.mubr.f32.gmra.mxu0 %v389
        %v555 = vpop.f32.mrf.mxu0
        %v556 = vadd.f32 %v370, %v555
        %v557 = vpop.f32.mrf.mxu0
        %v558 = vadd.f32 %v370, %v557
        %559 = vmatprep.mubr.f32.mxu0 0.0
        %560 = vmatmul.mubr.f32.gmra.mxu0 %v392
        %v561 = vpop.f32.mrf.mxu0
        %v562 = vadd.f32 %v375, %v561
        %v563 = vpop.f32.mrf.mxu0
        %v564 = vadd.f32 %v375, %v563
        %565 = vmatprep.mubr.f32.mxu0 0.0
        %566 = vmatmul.mubr.f32.gmra.mxu0 %v395
        %v567 = vpop.f32.mrf.mxu0
        %v568 = vadd.f32 %v380, %v567
        %v569 = vpop.f32.mrf.mxu0
        %v570 = vadd.f32 %v380, %v569
        %571 = vmatprep.mubr.f32.mxu0 0.0
        %572 = vmatmul.mubr.f32.gmra.mxu0 %v398
        %v573 = vpop.f32.mrf.mxu0
        %v574 = vadd.f32 %v385, %v573
        %v575 = vpop.f32.mrf.mxu0
        %v576 = vadd.f32 %v385, %v575
        %577 = vdwg.mxu0
        %v578 = vmax.f32 %v467, 0.0
        %v579 = vmax.f32 %v469, 0.0
        %v580 = vmax.f32 %v556, 0.0
        %v581 = vmax.f32 %v558, 0.0
        %v582 = vmax.f32 %v473, 0.0
        %v583 = vmax.f32 %v475, 0.0
        %v584 = vmax.f32 %v562, 0.0
        %v585 = vmax.f32 %v564, 0.0
        %v586 = vmax.f32 %v479, 0.0
        %v587 = vmax.f32 %v481, 0.0
        %v588 = vmax.f32 %v568, 0.0
        %v589 = vmax.f32 %v570, 0.0
        %v590 = vmax.f32 %v485, 0.0
        %v591 = vmax.f32 %v487, 0.0
        %v592 = vmax.f32 %v574, 0.0
        %v593 = vmax.f32 %v576, 0.0
        %594 = vst [vmem:[%s324] sm:$0xff] %v578
        %595 = vst [vmem:[%s324 + $0x8] sm:$0xff] %v579
        %596 = vst [vmem:[%s324 + $0x10] sm:$0xff] %v580
        %597 = vst [vmem:[%s324 + $0x18] sm:$0xff] %v581
        %598 = vst [vmem:[%s324 + $0x20] sm:$0xff] %v582
        %599 = vst [vmem:[%s324 + $0x28] sm:$0xff] %v583
        %600 = vst [vmem:[%s324 + $0x30] sm:$0xff] %v584
        %601 = vst [vmem:[%s324 + $0x38] sm:$0xff] %v585
        %602 = vst [vmem:[%s324 + $0x40] sm:$0xff] %v586
        %603 = vst [vmem:[%s324 + $0x48] sm:$0xff] %v587
        %604 = vst [vmem:[%s324 + $0x50] sm:$0xff] %v588
        %605 = vst [vmem:[%s324 + $0x58] sm:$0xff] %v589
        %606 = vst [vmem:[%s324 + $0x60] sm:$0xff] %v590
        %607 = vst [vmem:[%s324 + $0x68] sm:$0xff] %v591
        %608 = vst [vmem:[%s324 + $0x70] sm:$0xff] %v592
        %609 = vst [vmem:[%s324 + $0x78] sm:$0xff] %v593
        %v610 = vld [vmem:[%s4] sm:$0xff]
        %v611 = vld [vmem:[%s4 + $0x8] sm:$0xff]
        %v612 = vld [vmem:[%s5] sm:$0xff]
        %v613 = vld [vmem:[%s5 + $0x8] sm:$0xff]
        %615 = vset.pattern.permute.xlu0 0
        %616 = vperm.xlu0 %615, %v612
        %v617 = vpop.permute.xlu0 %616
        %620 = vset.pattern.permute.xlu0 0
        %621 = vperm.xlu0 %620, %v613
        %v622 = vpop.permute.xlu0 %621
        %v625 = vsel %vm387, %v610, 0
        %v628 = vsel %vm387, %v611, 0
        %630 = vmatprep.subr.mxu0 0.0
        %631 = vmatpush1.msra.mxu0 0.0
        %632 = vmatprep.subr.mxu0 0.0
        %633 = vmatpush1.msra.mxu0 0.0
        %634 = vmatprep.subr.mxu0 0.0
        %635 = vmatpush1.msra.mxu0 0.0
        %636 = vmatprep.subr.mxu0 0.0
        %637 = vmatpush1.msra.mxu0 0.0
        %638 = vmatprep.subr.mxu0 0.0
        %639 = vmatpush1.msra.mxu0 0.0
        %640 = vmatprep.subr.mxu0 0.0
        %641 = vmatpush1.msra.mxu0 0.0
        %642 = vmatprep.subr.mxu0 0.0
        %643 = vmatpush1.msra.mxu0 0.0
        %644 = vmatprep.subr.mxu0 0.0
        %645 = vmatpush1.msra.mxu0 0.0
        %646 = vmatprep.subr.mxu0 0.0
        %647 = vmatpush1.msra.mxu0 0.0
        %648 = vmatprep.subr.mxu0 0.0
        %649 = vmatpush1.msra.mxu0 0.0
        %650 = vmatprep.subr.mxu0 0.0
        %651 = vmatpush1.msra.mxu0 0.0
        %652 = vmatprep.subr.mxu0 0.0
        %653 = vmatpush1.msra.mxu0 0.0
        %654 = vmatprep.subr.mxu0 %v591
        %655 = vmatpush1.msra.mxu0 %v590
        %656 = vmatprep.subr.mxu0 %v587
        %657 = vmatpush1.msra.mxu0 %v586
        %658 = vmatprep.subr.mxu0 %v583
        %659 = vmatpush1.msra.mxu0 %v582
        %660 = vmatprep.subr.mxu0 %v579
        %661 = vmatpush1.msra.mxu0 %v578
        %662 = vmatprep.subr.mxu0 0.0
        %663 = vmatpush2.msra.mxu0 0.0
        %664 = vmatprep.subr.mxu0 0.0
        %665 = vmatpush2.msra.mxu0 0.0
        %666 = vmatprep.subr.mxu0 0.0
        %667 = vmatpush2.msra.mxu0 0.0
        %668 = vmatprep.subr.mxu0 0.0
        %669 = vmatpush2.msra.mxu0 0.0
        %670 = vmatprep.subr.mxu0 0.0
        %671 = vmatpush2.msra.mxu0 0.0
        %672 = vmatprep.subr.mxu0 0.0
        %673 = vmatpush2.msra.mxu0 0.0
        %674 = vmatprep.subr.mxu0 0.0
        %675 = vmatpush2.msra.mxu0 0.0
        %676 = vmatprep.subr.mxu0 0.0
        %677 = vmatpush2.msra.mxu0 0.0
        %678 = vmatprep.subr.mxu0 0.0
        %679 = vmatpush2.msra.mxu0 0.0
        %680 = vmatprep.subr.mxu0 0.0
        %681 = vmatpush2.msra.mxu0 0.0
        %682 = vmatprep.subr.mxu0 0.0
        %683 = vmatpush2.msra.mxu0 0.0
        %684 = vmatprep.subr.mxu0 0.0
        %685 = vmatpush2.msra.mxu0 0.0
        %686 = vmatprep.subr.mxu0 0.0
        %687 = vmatpush2.msra.mxu0 0.0
        %688 = vmatprep.subr.mxu0 0.0
        %689 = vmatpush2.msra.mxu0 0.0
        %690 = vmatprep.subr.mxu0 0.0
        %691 = vmatpush2.msra.mxu0 0.0
        %692 = vmatprep.subr.mxu0 0.0
        %693 = vmatpush2.msra.mxu0 0.0
        %694 = vmatprep.mubr.f32.mxu0 0.0
        %695 = vmatmul.mubr.f32.gmra.mxu0 %v625
        %v696 = vpop.f32.mrf.mxu0
        %v697 = vadd.f32 %v617, %v696
        %v698 = vpop.f32.mrf.mxu0
        %v699 = vadd.f32 %v617, %v698
        %700 = vmatprep.mubr.f32.mxu0 0.0
        %701 = vmatmul.mubr.f32.gmra.mxu0 %v628
        %v702 = vpop.f32.mrf.mxu0
        %v703 = vadd.f32 %v622, %v702
        %v704 = vpop.f32.mrf.mxu0
        %v705 = vadd.f32 %v622, %v704
        %706 = vdwg.mxu0
        %707 = vmatprep.subr.mxu0 0.0
        %708 = vmatpush1.msra.mxu0 0.0
        %709 = vmatprep.subr.mxu0 0.0
        %710 = vmatpush1.msra.mxu0 0.0
        %711 = vmatprep.subr.mxu0 0.0
        %712 = vmatpush1.msra.mxu0 0.0
        %713 = vmatprep.subr.mxu0 0.0
        %714 = vmatpush1.msra.mxu0 0.0
        %715 = vmatprep.subr.mxu0 0.0
        %716 = vmatpush1.msra.mxu0 0.0
        %717 = vmatprep.subr.mxu0 0.0
        %718 = vmatpush1.msra.mxu0 0.0
        %719 = vmatprep.subr.mxu0 0.0
        %720 = vmatpush1.msra.mxu0 0.0
        %721 = vmatprep.subr.mxu0 0.0
        %722 = vmatpush1.msra.mxu0 0.0
        %723 = vmatprep.subr.mxu0 0.0
        %724 = vmatpush1.msra.mxu0 0.0
        %725 = vmatprep.subr.mxu0 0.0
        %726 = vmatpush1.msra.mxu0 0.0
        %727 = vmatprep.subr.mxu0 0.0
        %728 = vmatpush1.msra.mxu0 0.0
        %729 = vmatprep.subr.mxu0 0.0
        %730 = vmatpush1.msra.mxu0 0.0
        %731 = vmatprep.subr.mxu0 %v593
        %732 = vmatpush1.msra.mxu0 %v592
        %733 = vmatprep.subr.mxu0 %v589
        %734 = vmatpush1.msra.mxu0 %v588
        %735 = vmatprep.subr.mxu0 %v585
        %736 = vmatpush1.msra.mxu0 %v584
        %737 = vmatprep.subr.mxu0 %v581
        %738 = vmatpush1.msra.mxu0 %v580
        %739 = vmatprep.subr.mxu0 0.0
        %740 = vmatpush2.msra.mxu0 0.0
        %741 = vmatprep.subr.mxu0 0.0
        %742 = vmatpush2.msra.mxu0 0.0
        %743 = vmatprep.subr.mxu0 0.0
        %744 = vmatpush2.msra.mxu0 0.0
        %745 = vmatprep.subr.mxu0 0.0
        %746 = vmatpush2.msra.mxu0 0.0
        %747 = vmatprep.subr.mxu0 0.0
        %748 = vmatpush2.msra.mxu0 0.0
        %749 = vmatprep.subr.mxu0 0.0
        %750 = vmatpush2.msra.mxu0 0.0
        %751 = vmatprep.subr.mxu0 0.0
        %752 = vmatpush2.msra.mxu0 0.0
        %753 = vmatprep.subr.mxu0 0.0
        %754 = vmatpush2.msra.mxu0 0.0
        %755 = vmatprep.subr.mxu0 0.0
        %756 = vmatpush2.msra.mxu0 0.0
        %757 = vmatprep.subr.mxu0 0.0
        %758 = vmatpush2.msra.mxu0 0.0
        %759 = vmatprep.subr.mxu0 0.0
        %760 = vmatpush2.msra.mxu0 0.0
        %761 = vmatprep.subr.mxu0 0.0
        %762 = vmatpush2.msra.mxu0 0.0
        %763 = vmatprep.subr.mxu0 0.0
        %764 = vmatpush2.msra.mxu0 0.0
        %765 = vmatprep.subr.mxu0 0.0
        %766 = vmatpush2.msra.mxu0 0.0
        %767 = vmatprep.subr.mxu0 0.0
        %768 = vmatpush2.msra.mxu0 0.0
        %769 = vmatprep.subr.mxu0 0.0
        %770 = vmatpush2.msra.mxu0 0.0
        %771 = vmatprep.mubr.f32.mxu0 0.0
        %772 = vmatmul.mubr.f32.gmra.mxu0 %v625
        %v773 = vpop.f32.mrf.mxu0
        %v774 = vadd.f32 %v617, %v773
        %v775 = vpop.f32.mrf.mxu0
        %v776 = vadd.f32 %v617, %v775
        %777 = vmatprep.mubr.f32.mxu0 0.0
        %778 = vmatmul.mubr.f32.gmra.mxu0 %v628
        %v779 = vpop.f32.mrf.mxu0
        %v780 = vadd.f32 %v622, %v779
        %v781 = vpop.f32.mrf.mxu0
        %v782 = vadd.f32 %v622, %v781
        %783 = vdwg.mxu0
        %784 = vst [vmem:[%s331] sm:$0xff] %v697
        %785 = vst [vmem:[%s331 + $0x8] sm:$0xff] %v699
        %786 = vst [vmem:[%s331 + $0x10] sm:$0xff] %v774
        %787 = vst [vmem:[%s331 + $0x18] sm:$0xff] %v776
        %788 = vst [vmem:[%s331 + $0x20] sm:$0xff] %v703
        %789 = vst [vmem:[%s331 + $0x28] sm:$0xff] %v705
        %790 = vst [vmem:[%s331 + $0x30] sm:$0xff] %v780
        %791 = vst [vmem:[%s331 + $0x38] sm:$0xff] %v782
        %v792 = vmin.f32 %v697, %v703
        %v793 = vrot.slane %v792, 4
        %v794 = vmin.f32 %v792, %v793
        %v795 = vrot.slane %v794, 2
        %v796 = vmin.f32 %v794, %v795
        %v797 = vrot.slane %v796, 1
        %v798 = vmin.f32 %v796, %v797
        %v799 = vmin.f32 %v699, %v705
        %v800 = vrot.slane %v799, 4
        %v801 = vmin.f32 %v799, %v800
        %v802 = vrot.slane %v801, 2
        %v803 = vmin.f32 %v801, %v802
        %v804 = vrot.slane %v803, 1
        %v805 = vmin.f32 %v803, %v804
        %v806 = vmin.f32 %v774, %v780
        %v807 = vrot.slane %v806, 4
        %v808 = vmin.f32 %v806, %v807
        %v809 = vrot.slane %v808, 2
        %v810 = vmin.f32 %v808, %v809
        %v811 = vrot.slane %v810, 1
        %v812 = vmin.f32 %v810, %v811
        %v813 = vmin.f32 %v776, %v782
        %v814 = vrot.slane %v813, 4
        %v815 = vmin.f32 %v813, %v814
        %v816 = vrot.slane %v815, 2
        %v817 = vmin.f32 %v815, %v816
        %v818 = vrot.slane %v817, 1
        %v819 = vmin.f32 %v817, %v818
        %v820 = vsub.f32 %v697, %v798
        %v821 = vsub.f32 %v699, %v805
        %v822 = vsub.f32 %v774, %v812
        %v823 = vsub.f32 %v776, %v819
        %v824 = vsub.f32 %v703, %v798
        %v825 = vsub.f32 %v705, %v805
        %v826 = vsub.f32 %v780, %v812
        %v827 = vsub.f32 %v782, %v819
        %s828 = sadd.s32 %s34, %s35
        %v829 = vlaneseq
        %v830 = vshrl.u32 %v829, 7
        %v831 = vadd.s32 %v830, 8
        %v832 = vlaneseq
        %v833 = vand.u32 %v832, 127
        %v834 = vadd.s32 %v833, 128
        %v835 = vadd.s32 %v833, 256
        %v836 = vadd.s32 %v833, 384
        %s837 = smul.u32 %s828, 512
        %v838 = vstv %s837
        %v839 = vadd.s32 %v838, %v833
        %v840 = vadd.s32 %v838, %v834
        %v841 = vadd.s32 %v838, %v835
        %v842 = vadd.s32 %v838, %v836
        %v843 = vmul.u32 %v839, 16
        %v844 = vmul.u32 %v840, 16
        %v845 = vmul.u32 %v841, 16
        %v846 = vmul.u32 %v842, 16
        %v847 = vadd.s32 %v843, %v830
        %v848 = vadd.s32 %v844, %v830
        %v849 = vadd.s32 %v845, %v830
        %v850 = vadd.s32 %v846, %v830
        %v851 = vadd.s32 %v843, %v831
        %v852 = vadd.s32 %v844, %v831
        %v853 = vadd.s32 %v845, %v831
        %v854 = vadd.s32 %v846, %v831
        %s855 = sld [smem:[#allocation3]]
        %s856 = smul.u32 %s855, 2221713035
        %v857 = vstv %s856
        %v858 = vxor.u32 %v847, %v857
        %v859 = vxor.u32 %v848, %v857
        %v860 = vxor.u32 %v849, %v857
        %v861 = vxor.u32 %v850, %v857
        %v862 = vxor.u32 %v851, %v857
        %v863 = vxor.u32 %v852, %v857
        %v864 = vxor.u32 %v853, %v857
        %v865 = vxor.u32 %v854, %v857
        %v866 = vmul.u32 %v858, 2146121005
        %v867 = vmul.u32 %v859, 2146121005
        %v868 = vmul.u32 %v860, 2146121005
        %v869 = vmul.u32 %v861, 2146121005
        %v870 = vmul.u32 %v862, 2146121005
        %v871 = vmul.u32 %v863, 2146121005
        %v872 = vmul.u32 %v864, 2146121005
        %v873 = vmul.u32 %v865, 2146121005
        %v874 = vshra.s32 %v866, 16
        %v875 = vshra.s32 %v867, 16
        %v876 = vshra.s32 %v868, 16
        %v877 = vshra.s32 %v869, 16
        %v878 = vshra.s32 %v870, 16
        %v879 = vshra.s32 %v871, 16
        %v880 = vshra.s32 %v872, 16
        %v881 = vshra.s32 %v873, 16
        %v882 = vand.u32 %v874, 65535
        %v883 = vand.u32 %v875, 65535
        %v884 = vand.u32 %v876, 65535
        %v885 = vand.u32 %v877, 65535
        %v886 = vand.u32 %v878, 65535
        %v887 = vand.u32 %v879, 65535
        %v888 = vand.u32 %v880, 65535
        %v889 = vand.u32 %v881, 65535
        %v890 = vxor.u32 %v866, %v882
        %v891 = vxor.u32 %v867, %v883
        %v892 = vxor.u32 %v868, %v884
        %v893 = vxor.u32 %v869, %v885
        %v894 = vxor.u32 %v870, %v886
        %v895 = vxor.u32 %v871, %v887
        %v896 = vxor.u32 %v872, %v888
        %v897 = vxor.u32 %v873, %v889
        %v898 = vshra.s32 %v890, 8
        %v899 = vshra.s32 %v891, 8
        %v900 = vshra.s32 %v892, 8
        %v901 = vshra.s32 %v893, 8
        %v902 = vshra.s32 %v894, 8
        %v903 = vshra.s32 %v895, 8
        %v904 = vshra.s32 %v896, 8
        %v905 = vshra.s32 %v897, 8
        %v906 = vand.u32 %v898, 16777215
        %v907 = vand.u32 %v899, 16777215
        %v908 = vand.u32 %v900, 16777215
        %v909 = vand.u32 %v901, 16777215
        %v910 = vand.u32 %v902, 16777215
        %v911 = vand.u32 %v903, 16777215
        %v912 = vand.u32 %v904, 16777215
        %v913 = vand.u32 %v905, 16777215
        %v914 = vcvt.s32.f32 %v906
        %v915 = vcvt.s32.f32 %v907
        %v916 = vcvt.s32.f32 %v908
        %v917 = vcvt.s32.f32 %v909
        %v918 = vcvt.s32.f32 %v910
        %v919 = vcvt.s32.f32 %v911
        %v920 = vcvt.s32.f32 %v912
        %v921 = vcvt.s32.f32 %v913
        %v922 = vadd.f32 %v914, 0.5
        %v923 = vadd.f32 %v915, 0.5
        %v924 = vadd.f32 %v916, 0.5
        %v925 = vadd.f32 %v917, 0.5
        %v926 = vadd.f32 %v918, 0.5
        %v927 = vadd.f32 %v919, 0.5
        %v928 = vadd.f32 %v920, 0.5
        %v929 = vadd.f32 %v921, 0.5
        %v930 = vmul.f32 %v922, 5.9604645e-08
        %v931 = vmul.f32 %v923, 5.9604645e-08
        %v932 = vmul.f32 %v924, 5.9604645e-08
        %v933 = vmul.f32 %v925, 5.9604645e-08
        %v934 = vmul.f32 %v926, 5.9604645e-08
        %v935 = vmul.f32 %v927, 5.9604645e-08
        %v936 = vmul.f32 %v928, 5.9604645e-08
        %v937 = vmul.f32 %v929, 5.9604645e-08
        %v938 = vlog2.pop %v930
        %v939 = vmul.f32 %v938, 0.6931472
        %v940 = vlog2.pop %v931
        %v941 = vmul.f32 %v940, 0.6931472
        %v942 = vlog2.pop %v932
        %v943 = vmul.f32 %v942, 0.6931472
        %v944 = vlog2.pop %v933
        %v945 = vmul.f32 %v944, 0.6931472
        %v946 = vlog2.pop %v934
        %v947 = vmul.f32 %v946, 0.6931472
        %v948 = vlog2.pop %v935
        %v949 = vmul.f32 %v948, 0.6931472
        %v950 = vlog2.pop %v936
        %v951 = vmul.f32 %v950, 0.6931472
        %v952 = vlog2.pop %v937
        %v953 = vmul.f32 %v952, 0.6931472
        %v954 = vsub.f32 0.0, %v939
        %v955 = vsub.f32 0.0, %v941
        %v956 = vsub.f32 0.0, %v943
        %v957 = vsub.f32 0.0, %v945
        %v958 = vsub.f32 0.0, %v947
        %v959 = vsub.f32 0.0, %v949
        %v960 = vsub.f32 0.0, %v951
        %v961 = vsub.f32 0.0, %v953
        %v962 = vrcp.pop %v954
        %v963 = vrcp.pop %v955
        %v964 = vrcp.pop %v956
        %v965 = vrcp.pop %v957
        %v966 = vrcp.pop %v958
        %v967 = vrcp.pop %v959
        %v968 = vrcp.pop %v960
        %v969 = vrcp.pop %v961
        %v970 = vmul.f32 %v820, %v962
        %v971 = vmul.f32 %v821, %v963
        %v972 = vmul.f32 %v822, %v964
        %v973 = vmul.f32 %v823, %v965
        %v974 = vmul.f32 %v824, %v966
        %v975 = vmul.f32 %v825, %v967
        %v976 = vmul.f32 %v826, %v968
        %v977 = vmul.f32 %v827, %v969
        %v978 = vmax.f32 %v970, %v974
        %v979 = vrot.slane %v978, 4
        %v980 = vmax.f32 %v978, %v979
        %v981 = vrot.slane %v980, 2
        %v982 = vmax.f32 %v980, %v981
        %v983 = vrot.slane %v982, 1
        %v984 = vmax.f32 %v982, %v983
        %v985 = vmax.f32 %v971, %v975
        %v986 = vrot.slane %v985, 4
        %v987 = vmax.f32 %v985, %v986
        %v988 = vrot.slane %v987, 2
        %v989 = vmax.f32 %v987, %v988
        %v990 = vrot.slane %v989, 1
        %v991 = vmax.f32 %v989, %v990
        %v992 = vmax.f32 %v972, %v976
        %v993 = vrot.slane %v992, 4
        %v994 = vmax.f32 %v992, %v993
        %v995 = vrot.slane %v994, 2
        %v996 = vmax.f32 %v994, %v995
        %v997 = vrot.slane %v996, 1
        %v998 = vmax.f32 %v996, %v997
        %v999 = vmax.f32 %v973, %v977
        %v1000 = vrot.slane %v999, 4
        %v1001 = vmax.f32 %v999, %v1000
        %v1002 = vrot.slane %v1001, 2
        %v1003 = vmax.f32 %v1001, %v1002
        %v1004 = vrot.slane %v1003, 1
        %v1005 = vmax.f32 %v1003, %v1004
        %vm1006 = vcmp.ge.f32.partialorder %v970, %v984
        %vm1007 = vcmp.ge.f32.partialorder %v971, %v991
        %vm1008 = vcmp.ge.f32.partialorder %v972, %v998
        %vm1009 = vcmp.ge.f32.partialorder %v973, %v1005
        %vm1010 = vcmp.ge.f32.partialorder %v974, %v984
        %vm1011 = vcmp.ge.f32.partialorder %v975, %v991
        %vm1012 = vcmp.ge.f32.partialorder %v976, %v998
        %vm1013 = vcmp.ge.f32.partialorder %v977, %v1005
        %v1014 = vcvt.s32.f32 %v830
        %v1015 = vcvt.s32.f32 %v831
        %v1016 = vsel %vm1006, %v1014, 16.0
        %v1017 = vsel %vm1007, %v1014, 16.0
        %v1018 = vsel %vm1008, %v1014, 16.0
        %v1019 = vsel %vm1009, %v1014, 16.0
        %v1020 = vsel %vm1010, %v1015, 16.0
        %v1021 = vsel %vm1011, %v1015, 16.0
        %v1022 = vsel %vm1012, %v1015, 16.0
        %v1023 = vsel %vm1013, %v1015, 16.0
        %v1024 = vmin.f32 %v1016, %v1020
        %v1025 = vrot.slane %v1024, 4
        %v1026 = vmin.f32 %v1024, %v1025
        %v1027 = vrot.slane %v1026, 2
        %v1028 = vmin.f32 %v1026, %v1027
        %v1029 = vrot.slane %v1028, 1
        %v1030 = vmin.f32 %v1028, %v1029
        %v1031 = vmin.f32 %v1017, %v1021
        %v1032 = vrot.slane %v1031, 4
        %v1033 = vmin.f32 %v1031, %v1032
        %v1034 = vrot.slane %v1033, 2
        %v1035 = vmin.f32 %v1033, %v1034
        %v1036 = vrot.slane %v1035, 1
        %v1037 = vmin.f32 %v1035, %v1036
        %v1038 = vmin.f32 %v1018, %v1022
        %v1039 = vrot.slane %v1038, 4
        %v1040 = vmin.f32 %v1038, %v1039
        %v1041 = vrot.slane %v1040, 2
        %v1042 = vmin.f32 %v1040, %v1041
        %v1043 = vrot.slane %v1042, 1
        %v1044 = vmin.f32 %v1042, %v1043
        %v1045 = vmin.f32 %v1019, %v1023
        %v1046 = vrot.slane %v1045, 4
        %v1047 = vmin.f32 %v1045, %v1046
        %v1048 = vrot.slane %v1047, 2
        %v1049 = vmin.f32 %v1047, %v1048
        %v1050 = vrot.slane %v1049, 1
        %v1051 = vmin.f32 %v1049, %v1050
        %v1052 = vcvt.f32.s32.to.zero.pseudo %v1030
        %v1053 = vcvt.f32.s32.to.zero.pseudo %v1037
        %v1054 = vcvt.f32.s32.to.zero.pseudo %v1044
        %v1055 = vcvt.f32.s32.to.zero.pseudo %v1051
        %v1056 = vcombine.low %v1052, %v1053
        %v1057 = vcombine.low %v1054, %v1055
        %v1059 = vunpack.c.l.s4 1966171168
        %v1060 = vunpack.c.0.s8 %v1059
        %v1061 = vlaneseq
        %v1062 = vshrl.u32 %v1061, 7
        %v1063 = vsub.s32 %v1060, %v1062
        %v1064 = vrot.slane %v1056, %v1063
        %v1066 = vunpack.c.l.s4 1966171168
        %v1067 = vunpack.c.0.s8 %v1066
        %v1068 = vlaneseq
        %v1069 = vshrl.u32 %v1068, 7
        %v1070 = vsub.s32 %v1067, %v1069
        %v1071 = vrot.slane %v1057, %v1070
        %v1072 = vcombine.low %v1064, %v1071
        %v1074 = vunpack.c.l.s4 1966171168
        %v1075 = vunpack.c.0.s8 %v1074
        %v1076 = vlaneseq
        %v1077 = vshrl.u32 %v1076, 7
        %v1078 = vsub.s32 %v1075, %v1077
        %v1079 = vrot.slane %v1072, %v1078
        %v1080 = vlaneseq
        %vm1081 = vcmp.ge.s32.totalorder %v1080, 0
        %vm1082 = vcmp.lt.s32.totalorder %v1080, 512
        %vm1083 = vmand %vm1081, %vm1082
        %1084 = vst.msk [vmem:[%s338] sm:$0xf] %vm1083, %v1079
        %s1085 = sand.u32 %s164, 1
        %s1086 = scalar_lea.sflag [#allocation6], %s1085
        %s1087 = sand.u32 %s164, 1
        %s1088 = smul.addr %s1087, 128
        %s1089 = scalar_lea.vmem [#allocation7], %s1088
        %s1090 = sand.u32 %s30, 1
        %s1091 = scalar_lea.sflag [#allocation9], %s1090
        %s1092 = sand.u32 %s192, 1
        %s1093 = smul.addr %s1092, 64
        %s1094 = scalar_lea.vmem [#allocation8], %s1093
        %s1095 = sand.u32 %s30, 1
        %s1096 = scalar_lea.sflag [#allocation9], %s1095
        %s1097 = sand.u32 %s220, 1
        %s1098 = smul.addr %s1097, 4
        %s1099 = scalar_lea.vmem [#allocation10], %s1098
        // Predicated region
        $region45: #{tpu_custom_call.1} parent=39 // pred_check
          %p1100 = pneg %p174
        $region46: #{tpu_custom_call.1} parent=39 // pred_check_branch
          %1102 = sbr.rel (%p1100) target = $region48
        $region47: #{tpu_custom_call.1} parent=39 // pred_region
          %s1103 = smul.u32 4, %s35
          %s1105 = ssub.s32 2048, 2048
          %1106 = vsyncadd %s1086, %s1105
          %s1107 = smul.addr %s34, 16
          %s1108 = sadd.s32 %s1103, %s1107
          %s1109 = smul.addr %s1108, 128
          %s1110 = scalar_lea.hbm %s6, %s1109
          %s1111 = sshll.u32 %s1089, 4
          %s1112 = int_to_ptr.vmem [resolvable:$true] %s1111
          %1117 = dma.vmem_to_hbm [thread:$0]  %s1112, 2048, %s1110, %s1086, 512, 512, 32
        $region48: #{tpu_custom_call.1} parent=39 // pred_fallthru
          _
        // Predicated region
        $region49: #{tpu_custom_call.1} parent=39 // pred_check
          %p1118 = pneg %p202
        $region50: #{tpu_custom_call.1} parent=39 // pred_check_branch
          %1120 = sbr.rel (%p1118) target = $region52
        $region51: #{tpu_custom_call.1} parent=39 // pred_region
          %s1121 = smul.u32 4, %s35
          %s1123 = ssub.s32 1024, 1024
          %1124 = vsyncadd %s1091, %s1123
          %s1125 = smul.addr %s34, 8
          %s1126 = sadd.s32 %s1121, %s1125
          %s1127 = smul.addr %s1126, 128
          %s1128 = scalar_lea.hbm %s7, %s1127
          %s1129 = sshll.u32 %s1094, 4
          %s1130 = int_to_ptr.vmem [resolvable:$true] %s1129
          %1135 = dma.vmem_to_hbm [thread:$0]  %s1130, 1024, %s1128, %s1091, 512, 512, 32
        $region52: #{tpu_custom_call.1} parent=39 // pred_fallthru
          _
        // Predicated region
        $region53: #{tpu_custom_call.1} parent=39 // pred_check
          %p1136 = pneg %p230
        $region54: #{tpu_custom_call.1} parent=39 // pred_check_branch
          %1138 = sbr.rel (%p1136) target = $region56
        $region55: #{tpu_custom_call.1} parent=39 // pred_region
          %s1139 = smul.u32 4, %s35
          %s1141 = ssub.s32 64, 64
          %1142 = vsyncadd %s1096, %s1141
          %s1143 = smul.addr %s34, 4
          %s1144 = sadd.s32 %s1139, %s1143
          %s1145 = smul.addr %s1144, 16
          %s1146 = scalar_lea.hbm %s8, %s1145
          %s1148 = sshll.u32 %s1099, 4
          %s1149 = int_to_ptr.vmem [resolvable:$true] %s1148
          %1151 = dma.vmem_to_hbm [thread:$0]  %s1149, 64, %s1146, %s1096
        $region56: #{tpu_custom_call.1} parent=39 // pred_fallthru
          _
      $region40: #{tpu_custom_call.1} parent=5 // pred_fallthru
        _
      %p1152 = scmp.le.s32.totalorder 2, %s25
      // Predicated region
      $region57: #{tpu_custom_call.1} parent=5 // pred_check
        %p1153 = pneg %p1152
      $region58: #{tpu_custom_call.1} parent=5 // pred_check_branch
        %1155 = sbr.rel (%p1153) target = $region60
      $region59: #{tpu_custom_call.1} parent=5 // pred_region
        %s1156 = ssub.s32 %s25, 2
        // Predicated region
        $region61: #{tpu_custom_call.1} parent=59 // pred_check
          %p1157 = pneg %p180
        $region62: #{tpu_custom_call.1} parent=59 // pred_check_branch
          %1159 = sbr.rel (%p1157) target = $region64
        $region63: #{tpu_custom_call.1} parent=59 // pred_region
          %s1160 = sand.u32 %s165, 1
          %s1161 = scalar_lea.sflag [#allocation6], %s1160
          %s1162 = sand.u32 %s165, 1
          %s1163 = smul.addr %s1162, 128
          %s1164 = scalar_lea.vmem [#allocation7], %s1163
          %1165 = dma.done %s1161, 2048
        $region64: #{tpu_custom_call.1} parent=59 // pred_fallthru
          _
        // Predicated region
        $region65: #{tpu_custom_call.1} parent=59 // pred_check
          %p1166 = pneg %p208
        $region66: #{tpu_custom_call.1} parent=59 // pred_check_branch
          %1168 = sbr.rel (%p1166) target = $region68
        $region67: #{tpu_custom_call.1} parent=59 // pred_region
          %s1169 = sand.u32 %s31, 1
          %s1170 = scalar_lea.sflag [#allocation9], %s1169
          %s1171 = sand.u32 %s193, 1
          %s1172 = smul.addr %s1171, 64
          %s1173 = scalar_lea.vmem [#allocation8], %s1172
          %1174 = dma.done %s1170, 1024
        $region68: #{tpu_custom_call.1} parent=59 // pred_fallthru
          _
        // Predicated region
        $region69: #{tpu_custom_call.1} parent=59 // pred_check
          %p1175 = pneg %p236
        $region70: #{tpu_custom_call.1} parent=59 // pred_check_branch
          %1177 = sbr.rel (%p1175) target = $region72
        $region71: #{tpu_custom_call.1} parent=59 // pred_region
          %s1178 = sand.u32 %s31, 1
          %s1179 = scalar_lea.sflag [#allocation9], %s1178
          %s1180 = sand.u32 %s221, 1
          %s1181 = smul.addr %s1180, 4
          %s1182 = scalar_lea.vmem [#allocation10], %s1181
          %1183 = dma.done %s1179, 64
        $region72: #{tpu_custom_call.1} parent=59 // pred_fallthru
          _
      $region60: #{tpu_custom_call.1} parent=5 // pred_fallthru
        _
    $region6: #{tpu_custom_call.1} parent=1 // loop_footer
      %s29 = sadd.s32 1, %s25
    $region7: #{tpu_custom_call.1} parent=1 // loop_footer_branch
      %24 = sbr.rel target = $region3
    $region8: #{tpu_custom_call.1} parent=1 // loop_exit
      _
    %1184 = vsyncpa [#allocation5], 1
    %s1185 = scalar_lea.sflag [#allocation5], 1
    %1186 = vsyncpa %s1185, 1
    %1187 = vsyncpa [#allocation6], 1
    %s1188 = scalar_lea.sflag [#allocation6], 1
    %1189 = vsyncpa %s1188, 1
    %1190 = vsyncpa [#allocation9], 1
    %s1191 = scalar_lea.sflag [#allocation9], 1
    %1192 = vsyncpa %s1191, 1

</llo_original>
